<compile_context>
chip_gen: v7x
topology: tpu7x:2x2x1
jax: 0.10.0
libtpu: 0.0.40
codegen_flags: <defaults>
</compile_context>

<pallas_src>
import numpy as np
import jax
import jax.numpy as jnp
from jax.experimental import pallas as pl
from jax.experimental.pallas import tpu as pltpu


# ----------------------------------------------------------------------------
# Host-side graph preprocessing (scatter-mean -> dense normalized operator)
# ----------------------------------------------------------------------------
def build_mean_aggregation_matrix(num_nodes, edge_index):
    """Dense A with A[i, j] = (# edges j -> i) / indeg(i); zero rows for indeg 0.

    Matches PyG SAGEConv's default mean aggregation with flow source->target
    (edge_index[0] = source j, edge_index[1] = target i), duplicates counted.
    """
    a = np.zeros((num_nodes, num_nodes), dtype=np.float32)
    src = np.asarray(edge_index[0]).astype(np.int64)
    dst = np.asarray(edge_index[1]).astype(np.int64)
    np.add.at(a, (dst, src), 1.0)
    deg = a.sum(axis=1, keepdims=True)
    return np.where(deg > 0, a / np.maximum(deg, 1.0), 0.0).astype(np.float32)


def _round_up(v, m):
    return ((v + m - 1) // m) * m


def _pad_to(arr, rows, cols):
    r, c = arr.shape
    return jnp.pad(arr, ((0, rows - r), (0, cols - c)))


# ----------------------------------------------------------------------------
# Fused single-row-tile SAGEConv kernel
#   grid = (n_k,)  ["arbitrary"]  — reduction over the N columns of A
#   acc  = (tm, 2*fin) f32 VMEM scratch: [ running A@x partial | x_root rows ]
#   last k step:  out = acc @ [Wl^T ; Wr^T] + b   (one 2*fin-deep MXU matmul)
# ----------------------------------------------------------------------------
def _sage_row_tile_kernel(a_ref, xk_ref, xr_ref, wcat_ref, b_ref, out_ref,
                          acc_ref):
    k = pl.program_id(0)
    tm = acc_ref.shape[0]
    fin = xr_ref.shape[1]

    @pl.when(k == 0)
    def _init():
        acc_ref[:, :fin] = jnp.zeros((tm, fin), jnp.float32)
        acc_ref[:, fin:] = xr_ref[...].astype(jnp.float32)

    # Partial aggregation: (tm, tk) @ (tk, fin) on the MXU, f32 accumulation.
    acc_ref[:, :fin] += jnp.dot(a_ref[...], xk_ref[...],
                                preferred_element_type=jnp.float32)

    @pl.when(k == pl.num_programs(0) - 1)
    def _finalize():
        # Fused epilogue: [agg | x_root] @ [Wl^T ; Wr^T], f32 in / f32 out
        # (no bf16 round-trip of the accumulator), bias add on the VPU.
        out = jnp.dot(acc_ref[...], wcat_ref[...],
                      preferred_element_type=jnp.float32)
        out_ref[...] = out + b_ref[...]


def sage_conv_row_tile(x, agg_mat, wl_t, wr_t, bias, *, tm=128, tk=256,
                       use_bf16=False):
    """Rows [0, tm) of  (A @ x) @ Wl^T + x @ Wr^T + b, shape (tm, F_out)."""
    n, f_in = x.shape
    f_out = wl_t.shape[1]

    ncol_pad = _round_up(n, tk)          # reduction extent (columns of A)
    fin_pad = _round_up(f_in, 128)
    fout_pad = _round_up(f_out, 128)

    cdt = jnp.bfloat16 if use_bf16 else jnp.float32

    # A row slab: only the first tm rows — the wrapper consumes just row 0.
    a_slab = _pad_to(jnp.asarray(agg_mat)[: min(tm, n)], tm, ncol_pad).astype(cdt)

    # x for the reduction path (optionally bf16) and the root path (f32).
    x_arr = jnp.asarray(x)
    x_k = _pad_to(x_arr, ncol_pad, fin_pad).astype(cdt)
    x_r = _pad_to(x_arr[: min(tm, n)], tm, fin_pad).astype(jnp.float32)

    # Fused weights [Wl^T ; Wr^T]; weights/bias stay f32.
    wl_p = _pad_to(jnp.asarray(wl_t), fin_pad, fout_pad)
    wr_p = _pad_to(jnp.asarray(wr_t), fin_pad, fout_pad)
    w_cat = jnp.concatenate([wl_p, wr_p], axis=0).astype(jnp.float32)
    b_p = _pad_to(jnp.asarray(bias).reshape(1, -1), 1, fout_pad).astype(jnp.float32)

    n_k = ncol_pad // tk
    itm = 2 if use_bf16 else 4
    flops = 2 * tm * ncol_pad * fin_pad + 2 * tm * (2 * fin_pad) * fout_pad
    bytes_accessed = (a_slab.size * itm + x_k.size * itm + x_r.size * 4
                      + w_cat.size * 4 + b_p.size * 4 + tm * fout_pad * 4)

    out = pl.pallas_call(
        _sage_row_tile_kernel,
        out_shape=jax.ShapeDtypeStruct((tm, fout_pad), jnp.float32),
        grid=(n_k,),
        in_specs=[
            pl.BlockSpec((tm, tk), lambda k: (0, k)),               # A slab tile
            pl.BlockSpec((tk, fin_pad), lambda k: (k, 0)),          # x rows (reduction)
            pl.BlockSpec((tm, fin_pad), lambda k: (0, 0)),          # x root rows (k-invariant)
            pl.BlockSpec((2 * fin_pad, fout_pad), lambda k: (0, 0)),  # [Wl^T ; Wr^T]
            pl.BlockSpec((1, fout_pad), lambda k: (0, 0)),          # bias
        ],
        out_specs=pl.BlockSpec((tm, fout_pad), lambda k: (0, 0)),
        scratch_shapes=[pltpu.VMEM((tm, 2 * fin_pad), jnp.float32)],
        compiler_params=pltpu.CompilerParams(
            dimension_semantics=("arbitrary",)),
        cost_estimate=pl.CostEstimate(
            flops=flops, transcendentals=0, bytes_accessed=bytes_accessed),
    )(a_slab, x_k, x_r, w_cat, b_p)

    return out[:, :f_out]


def sageconv_wrapper_forward(x, agg_mat, wl_t, wr_t, bias, **kw):
    """SAGEConv_wrapper.forward: run SAGEConv, return row 0 as (1, F_out)."""
    out_rows = sage_conv_row_tile(x, agg_mat, wl_t, wr_t, bias, **kw)
    # torch:  out = self.f(data.x, data.edge_index); out = out[0].unsqueeze(0)
    return out_rows[0:1, :]


# ----------------------------------------------------------------------------
# Pure-JAX reference for correctness check
# ----------------------------------------------------------------------------
def reference_forward(x, agg_mat, wl_t, wr_t, bias):
    agg = agg_mat @ x
    out = agg @ wl_t + bias.reshape(1, -1) + x @ wr_t
    return out[0:1, :]


if __name__ == "__main__":
    # Small shapes consistent with the module (defaults IN=100, OUT=200).
    N_NODES = 200
    N_EDGES = 800
    INPUT_DIMENSION = 100
    OUTPUT_DIMENSION = 200

    key = jax.random.PRNGKey(0)
    k_e, k_x, k_wl, k_wr, k_b = jax.random.split(key, 5)

    edge_index = np.asarray(
        jax.random.randint(k_e, (2, N_EDGES), 0, N_NODES, dtype=jnp.int32))
    agg_mat = jnp.asarray(build_mean_aggregation_matrix(N_NODES, edge_index))

    x = jax.random.normal(k_x, (N_NODES, INPUT_DIMENSION), jnp.float32)
    # torch Linear stores weights as (out, in); we use the transposed (in, out).
    wl_t = jax.random.normal(k_wl, (INPUT_DIMENSION, OUTPUT_DIMENSION), jnp.float32) * 0.1
    wr_t = jax.random.normal(k_wr, (INPUT_DIMENSION, OUTPUT_DIMENSION), jnp.float32) * 0.1
    bias = jax.random.normal(k_b, (OUTPUT_DIMENSION,), jnp.float32) * 0.1

    ref = reference_forward(x, agg_mat, wl_t, wr_t, bias)

    # f32 path, tk=256: single grid step (everything resident in VMEM).
    out_f32 = jax.block_until_ready(
        sageconv_wrapper_forward(x, agg_mat, wl_t, wr_t, bias,
                                 tk=256, use_bf16=False))
    assert out_f32.shape == (1, OUTPUT_DIMENSION), out_f32.shape
    np.testing.assert_allclose(np.asarray(out_f32), np.asarray(ref),
                               rtol=1e-4, atol=1e-4)

    # f32 path, tk=128: exercises the multi-step k reduction / accumulator.
    out_f32_k128 = jax.block_until_ready(
        sageconv_wrapper_forward(x, agg_mat, wl_t, wr_t, bias,
                                 tk=128, use_bf16=False))
    np.testing.assert_allclose(np.asarray(out_f32_k128), np.asarray(ref),
                               rtol=1e-4, atol=1e-4)

    # bf16 A / x on the MXU (all generations), f32 accumulation + f32 epilogue.
    out_bf16 = jax.block_until_ready(
        sageconv_wrapper_forward(x, agg_mat, wl_t, wr_t, bias,
                                 tk=256, use_bf16=True))
    np.testing.assert_allclose(np.asarray(out_bf16), np.asarray(ref),
                               rtol=5e-2, atol=5e-2)

    print("KERNEL_OK")
</pallas_src>

<mosaic_0001>
module attributes {stable_mosaic.version = 11 : i64} {
  func.func @_sage_row_tile_kernel(%arg0: i32, %arg1: memref<128x256xf32, #tpu.memory_space<vmem>>, %arg2: memref<256x128xf32, #tpu.memory_space<vmem>>, %arg3: memref<128x128xf32, #tpu.memory_space<vmem>>, %arg4: memref<256x256xf32, #tpu.memory_space<vmem>>, %arg5: memref<1x256xf32, #tpu.memory_space<vmem>>, %arg6: memref<128x256xf32, #tpu.memory_space<vmem>>, %arg7: memref<128x256xf32, #tpu.memory_space<vmem>>) attributes {dimension_semantics = [#tpu.dimension_semantics<arbitrary>], iteration_bounds = array<i64: 1>, scalar_prefetch = 0 : i64, scratch_operands = 1 : i64, tpu.core_type = #tpu.core_type<tc>, window_params = [{transform_indices = @transform_0, window_bounds = array<i64: 128, 256>}, {transform_indices = @transform_1, window_bounds = array<i64: 256, 128>}, {pipeline_mode = #tpu.pipeline_mode<synchronous>, transform_indices = @transform_2, window_bounds = array<i64: 128, 128>}, {pipeline_mode = #tpu.pipeline_mode<synchronous>, transform_indices = @transform_3, window_bounds = array<i64: 256, 256>}, {pipeline_mode = #tpu.pipeline_mode<synchronous>, transform_indices = @transform_4, window_bounds = array<i64: 1, 256>}, {pipeline_mode = #tpu.pipeline_mode<synchronous>, transform_indices = @transform_5, window_bounds = array<i64: 128, 256>}]} {
    %c0_i32 = arith.constant 0 : i32
    %0 = arith.cmpi eq, %arg0, %c0_i32 : i32
    %1 = arith.extui %0 : i1 to i32
    %c0_i32_0 = arith.constant 0 : i32
    %2 = arith.cmpi ne, %1, %c0_i32_0 : i32
    scf.if %2 {
      %cst_10 = arith.constant 0.000000e+00 : f32
      %12 = vector.broadcast %cst_10 : f32 to vector<128x128xf32>
      %c0_11 = arith.constant 0 : index
      %c0_12 = arith.constant 0 : index
      %13 = vector.load %arg7[%c0_11, %c0_12] : memref<128x256xf32, #tpu.memory_space<vmem>>, vector<128x128xf32>
      tpu.vector_store %arg7[%c0_11, %c0_12], %12 {strides = array<i32>} : memref<128x256xf32, #tpu.memory_space<vmem>>, vector<128x128xf32>,
      %c0_13 = arith.constant 0 : index
      %c0_14 = arith.constant 0 : index
      %14 = vector.load %arg3[%c0_13, %c0_14] : memref<128x128xf32, #tpu.memory_space<vmem>>, vector<128x128xf32>
      %c0_15 = arith.constant 0 : index
      %c128 = arith.constant 128 : index
      %15 = vector.load %arg7[%c0_15, %c128] : memref<128x256xf32, #tpu.memory_space<vmem>>, vector<128x128xf32>
      tpu.vector_store %arg7[%c0_15, %c128], %14 {strides = array<i32>} : memref<128x256xf32, #tpu.memory_space<vmem>>, vector<128x128xf32>,
    } else {
    }
    %c0 = arith.constant 0 : index
    %c0_1 = arith.constant 0 : index
    %3 = vector.load %arg7[%c0, %c0_1] : memref<128x256xf32, #tpu.memory_space<vmem>>, vector<128x128xf32>
    %c0_2 = arith.constant 0 : index
    %c0_3 = arith.constant 0 : index
    %4 = vector.load %arg1[%c0_2, %c0_3] : memref<128x256xf32, #tpu.memory_space<vmem>>, vector<128x256xf32>
    %c0_4 = arith.constant 0 : index
    %c0_5 = arith.constant 0 : index
    %5 = vector.load %arg2[%c0_4, %c0_5] : memref<256x128xf32, #tpu.memory_space<vmem>>, vector<256x128xf32>
    %cst = arith.constant dense<0.000000e+00> : vector<128x128xf32>
    %6 = tpu.matmul %4, %5, %cst {dimension_numbers = #tpu.dot_dimension_numbers<[1], [0], [0], [1], [0, 0, 1, 1], [], []>} : vector<128x256xf32>, vector<256x128xf32>, vector<128x128xf32> -> vector<128x128xf32>
    %7 = arith.addf %3, %6 : vector<128x128xf32>
    %c0_6 = arith.constant 0 : index
    %c0_7 = arith.constant 0 : index
    %8 = vector.load %arg7[%c0_6, %c0_7] : memref<128x256xf32, #tpu.memory_space<vmem>>, vector<128x128xf32>
    tpu.vector_store %arg7[%c0_6, %c0_7], %7 {strides = array<i32>} : memref<128x256xf32, #tpu.memory_space<vmem>>, vector<128x128xf32>,
    %c0_i32_8 = arith.constant 0 : i32
    %9 = arith.cmpi eq, %arg0, %c0_i32_8 : i32
    %10 = arith.extui %9 : i1 to i32
    %c0_i32_9 = arith.constant 0 : i32
    %11 = arith.cmpi ne, %10, %c0_i32_9 : i32
    scf.if %11 {
      %c0_10 = arith.constant 0 : index
      %c0_11 = arith.constant 0 : index
      %12 = vector.load %arg7[%c0_10, %c0_11] : memref<128x256xf32, #tpu.memory_space<vmem>>, vector<128x256xf32>
      %c0_12 = arith.constant 0 : index
      %c0_13 = arith.constant 0 : index
      %13 = vector.load %arg4[%c0_12, %c0_13] : memref<256x256xf32, #tpu.memory_space<vmem>>, vector<256x256xf32>
      %cst_14 = arith.constant dense<0.000000e+00> : vector<128x256xf32>
      %14 = tpu.matmul %12, %13, %cst_14 {dimension_numbers = #tpu.dot_dimension_numbers<[1], [0], [0], [1], [0, 0, 1, 1], [], []>} : vector<128x256xf32>, vector<256x256xf32>, vector<128x256xf32> -> vector<128x256xf32>
      %c0_15 = arith.constant 0 : index
      %c0_16 = arith.constant 0 : index
      %15 = vector.load %arg5[%c0_15, %c0_16] : memref<1x256xf32, #tpu.memory_space<vmem>>, vector<1x256xf32>
      %16 = vector.broadcast %15 : vector<1x256xf32> to vector<128x256xf32>
      %17 = arith.addf %14, %16 : vector<128x256xf32>
      %c0_17 = arith.constant 0 : index
      %c0_18 = arith.constant 0 : index
      %18 = vector.load %arg6[%c0_17, %c0_18] : memref<128x256xf32, #tpu.memory_space<vmem>>, vector<128x256xf32>
      tpu.vector_store %arg6[%c0_17, %c0_18], %17 {strides = array<i32>} : memref<128x256xf32, #tpu.memory_space<vmem>>, vector<128x256xf32>,
    } else {
    }
    return
  }
  func.func @transform_0(%arg0: i32) -> (i32, i32) {
    %c0_i32 = arith.constant 0 : i32
    %c0_i32_0 = arith.constant 0 : i32
    return %c0_i32, %arg0 : i32, i32
  }
  func.func @transform_1(%arg0: i32) -> (i32, i32) {
    %c0_i32 = arith.constant 0 : i32
    %c0_i32_0 = arith.constant 0 : i32
    return %arg0, %c0_i32 : i32, i32
  }
  func.func @transform_2(%arg0: i32) -> (i32, i32) {
    %c0_i32 = arith.constant 0 : i32
    %c0_i32_0 = arith.constant 0 : i32
    %c0_i32_1 = arith.constant 0 : i32
    return %c0_i32, %c0_i32_0 : i32, i32
  }
  func.func @transform_3(%arg0: i32) -> (i32, i32) {
    %c0_i32 = arith.constant 0 : i32
    %c0_i32_0 = arith.constant 0 : i32
    %c0_i32_1 = arith.constant 0 : i32
    return %c0_i32, %c0_i32_0 : i32, i32
  }
  func.func @transform_4(%arg0: i32) -> (i32, i32) {
    %c0_i32 = arith.constant 0 : i32
    %c0_i32_0 = arith.constant 0 : i32
    %c0_i32_1 = arith.constant 0 : i32
    return %c0_i32, %c0_i32_0 : i32, i32
  }
  func.func @transform_5(%arg0: i32) -> (i32, i32) {
    %c0_i32 = arith.constant 0 : i32
    %c0_i32_0 = arith.constant 0 : i32
    %c0_i32_1 = arith.constant 0 : i32
    return %c0_i32, %c0_i32_0 : i32, i32
  }
}

</mosaic_0001>

<llo_original>
// kernel: tpu_custom_call.1
$region0: #{tpu_custom_call.1}
  #allocation0 [shape = 'u32[]', space=smem, size = 0x4, offset = 0x4, fixed_abs, tag = 'smem constant byte address 0x4 - core index']
  #allocation1 [shape = 'u32[144,128]{1,0:T(1,128)}', space=vmem, size = 0x12000, scoped, tag = 'internal scratch']
  #allocation2 [shape = 'f32[128,256]{1,0:T(8,128)}', space=vmem, size = 0x20000, scoped, tag = 'scratch operand']
  %s0 = inlined_call_operand.hbm [shape: f32[128,256], index: 0, kind: input, shape index: {}]
  %s1 = inlined_call_operand.hbm [shape: f32[256,128], index: 1, kind: input, shape index: {}]
  %s2 = inlined_call_operand.hbm [shape: f32[128,128], index: 2, kind: input, shape index: {}]
  %s3 = inlined_call_operand.hbm [shape: f32[256,256], index: 3, kind: input, shape index: {}]
  %s4 = inlined_call_operand.vmem [shape: f32[1,256], index: 4, kind: input, shape index: {}]
  %s5 = inlined_call_operand.hbm [shape: f32[128,256], index: 5, kind: output, shape index: {}]
  %s6 = sld [smem:[#allocation0]]
  $region54: #{tpu_custom_call.1} parent=0
    _
  %s8 = ssub.s32 1, %s6
  %s9 = scalar_select 0, %s8, %s6
  $region1: #{tpu_custom_call.1} parent=0
    #allocation3 [shape = 'u8[131072]{0}', space=vmem, size = 0x20000, scoped, tag = 'input window, operand 0, single buffered']
    #allocation4 [shape = 's32[1]{0}', space=sflag, size = 0x4, scoped, tag = 'scoped memory for tpu_custom_call.1']
    #allocation5 [shape = 's32[1]{0}', space=sflag, size = 0x4, scoped, tag = 'scoped memory for tpu_custom_call.1']
    #allocation6 [shape = 'u8[131072]{0}', space=vmem, size = 0x20000, scoped, tag = 'input window, operand 1, single buffered']
    #allocation7 [shape = 's32[1]{0}', space=sflag, size = 0x4, scoped, tag = 'scoped memory for tpu_custom_call.1']
    #allocation8 [shape = 'u8[65536]{0}', space=vmem, size = 0x10000, scoped, tag = 'input window, operand 2, single buffered']
    #allocation9 [shape = 'u8[262144]{0}', space=vmem, size = 0x40000, scoped, tag = 'input window, operand 3, single buffered']
    #allocation10 [shape = 's32[1]{0}', space=sflag, size = 0x4, scoped, tag = 'scoped memory for tpu_custom_call.1']
    #allocation11 [shape = 'u8[131072]{0}', space=vmem, size = 0x20000, scoped, tag = 'output window, operand 0, single buffered']
    %10 = vsyncpa [#allocation4], 0
    %11 = vsyncpa [#allocation7], 0
    %12 = vsyncpa [#allocation10], 0
    %13 = vsyncpa [#allocation5], 0
    // Predicated region
    $region2: #{tpu_custom_call.1} parent=1 // pred_check
      _
    $region3: #{tpu_custom_call.1} parent=1 // pred_check_branch
      %15 = sbr.rel (0) target = $region5
    $region4: #{tpu_custom_call.1} parent=1 // pred_region
      %s17 = ssub.s32 4096, 4096
      %18 = vsyncadd [#allocation4], %s17
      %s19 = sshll.u32 [#allocation3], 4
      %s20 = int_to_ptr.vmem [resolvable:$true] %s19
      %25 = dma.hbm_to_vmem [thread:$0]  %s0, 4096, %s20, [#allocation4], 256, 256, 16
    $region5: #{tpu_custom_call.1} parent=1 // pred_fallthru
      _
    // Predicated region
    $region6: #{tpu_custom_call.1} parent=1 // pred_check
      _
    $region7: #{tpu_custom_call.1} parent=1 // pred_check_branch
      %27 = sbr.rel (0) target = $region9
    $region8: #{tpu_custom_call.1} parent=1 // pred_region
      %s29 = ssub.s32 4096, 4096
      %30 = vsyncadd [#allocation7], %s29
      %s31 = sshll.u32 [#allocation6], 4
      %s32 = int_to_ptr.vmem [resolvable:$true] %s31
      %37 = dma.hbm_to_vmem [thread:$0]  %s1, 4096, %s32, [#allocation7], 128, 128, 8
    $region9: #{tpu_custom_call.1} parent=1 // pred_fallthru
      _
    // Predicated region
    $region10: #{tpu_custom_call.1} parent=1 // pred_check
      _
    $region11: #{tpu_custom_call.1} parent=1 // pred_check_branch
      %39 = sbr.rel (0) target = $region13
    $region12: #{tpu_custom_call.1} parent=1 // pred_region
      %s41 = ssub.s32 2048, 2048
      %42 = vsyncadd [#allocation7], %s41
      %s43 = sshll.u32 [#allocation8], 4
      %s44 = int_to_ptr.vmem [resolvable:$true] %s43
      %49 = dma.hbm_to_vmem [thread:$0]  %s2, 2048, %s44, [#allocation7], 128, 128, 8
    $region13: #{tpu_custom_call.1} parent=1 // pred_fallthru
      _
    // Predicated region
    $region14: #{tpu_custom_call.1} parent=1 // pred_check
      _
    $region15: #{tpu_custom_call.1} parent=1 // pred_check_branch
      %51 = sbr.rel (0) target = $region17
    $region16: #{tpu_custom_call.1} parent=1 // pred_region
      %s53 = ssub.s32 8192, 8192
      %54 = vsyncadd [#allocation10], %s53
      %s55 = sshll.u32 [#allocation9], 4
      %s56 = int_to_ptr.vmem [resolvable:$true] %s55
      %61 = dma.hbm_to_vmem [thread:$0]  %s3, 8192, %s56, [#allocation10], 256, 256, 16
    $region17: #{tpu_custom_call.1} parent=1 // pred_fallthru
      _
    // Predicated region
    $region18: #{tpu_custom_call.1} parent=1 // pred_check
      _
    $region19: #{tpu_custom_call.1} parent=1 // pred_check_branch
      %63 = sbr.rel (0) target = $region21
    $region20: #{tpu_custom_call.1} parent=1 // pred_region
      _
    $region21: #{tpu_custom_call.1} parent=1 // pred_fallthru
      _
    // Predicated region
    $region22: #{tpu_custom_call.1} parent=1 // pred_check
      _
    $region23: #{tpu_custom_call.1} parent=1 // pred_check_branch
      %65 = sbr.rel (0) target = $region25
    $region24: #{tpu_custom_call.1} parent=1 // pred_region
      %66 = dma.done [#allocation4], 4096
    $region25: #{tpu_custom_call.1} parent=1 // pred_fallthru
      _
    // Predicated region
    $region26: #{tpu_custom_call.1} parent=1 // pred_check
      _
    $region27: #{tpu_custom_call.1} parent=1 // pred_check_branch
      %68 = sbr.rel (0) target = $region29
    $region28: #{tpu_custom_call.1} parent=1 // pred_region
      %69 = dma.done [#allocation7], 4096
    $region29: #{tpu_custom_call.1} parent=1 // pred_fallthru
      _
    // Predicated region
    $region30: #{tpu_custom_call.1} parent=1 // pred_check
      _
    $region31: #{tpu_custom_call.1} parent=1 // pred_check_branch
      %71 = sbr.rel (0) target = $region33
    $region32: #{tpu_custom_call.1} parent=1 // pred_region
      %72 = dma.done [#allocation7], 2048
    $region33: #{tpu_custom_call.1} parent=1 // pred_fallthru
      _
    // Predicated region
    $region34: #{tpu_custom_call.1} parent=1 // pred_check
      _
    $region35: #{tpu_custom_call.1} parent=1 // pred_check_branch
      %74 = sbr.rel (0) target = $region37
    $region36: #{tpu_custom_call.1} parent=1 // pred_region
      %75 = dma.done [#allocation10], 8192
    $region37: #{tpu_custom_call.1} parent=1 // pred_fallthru
      _
    %p76 = scmp.eq.s32.totalorder 0, 0
    // Predicated region
    $region38: #{tpu_custom_call.1} parent=1 // pred_check
      %p77 = pneg %p76
    $region39: #{tpu_custom_call.1} parent=1 // pred_check_branch
      %79 = sbr.rel (%p77) target = $region41
    $region40: #{tpu_custom_call.1} parent=1 // pred_region
      %80 = vst [vmem:[#allocation2] sm:$0xff] 0.0
      %81 = vst [vmem:[#allocation2 + $0x10] sm:$0xff] 0.0
      %82 = vst [vmem:[#allocation2 + $0x20] sm:$0xff] 0.0
      %83 = vst [vmem:[#allocation2 + $0x30] sm:$0xff] 0.0
      %84 = vst [vmem:[#allocation2 + $0x40] sm:$0xff] 0.0
      %85 = vst [vmem:[#allocation2 + $0x50] sm:$0xff] 0.0
      %86 = vst [vmem:[#allocation2 + $0x60] sm:$0xff] 0.0
      %87 = vst [vmem:[#allocation2 + $0x70] sm:$0xff] 0.0
      %88 = vst [vmem:[#allocation2 + $0x80] sm:$0xff] 0.0
      %89 = vst [vmem:[#allocation2 + $0x90] sm:$0xff] 0.0
      %90 = vst [vmem:[#allocation2 + $0xa0] sm:$0xff] 0.0
      %91 = vst [vmem:[#allocation2 + $0xb0] sm:$0xff] 0.0
      %92 = vst [vmem:[#allocation2 + $0xc0] sm:$0xff] 0.0
      %93 = vst [vmem:[#allocation2 + $0xd0] sm:$0xff] 0.0
      %94 = vst [vmem:[#allocation2 + $0xe0] sm:$0xff] 0.0
      %95 = vst [vmem:[#allocation2 + $0xf0] sm:$0xff] 0.0
      %v96 = vld [vmem:[#allocation8] sm:$0xff]
      %v97 = vld [vmem:[#allocation8 + $0x8] sm:$0xff]
      %v98 = vld [vmem:[#allocation8 + $0x10] sm:$0xff]
      %v99 = vld [vmem:[#allocation8 + $0x18] sm:$0xff]
      %v100 = vld [vmem:[#allocation8 + $0x20] sm:$0xff]
      %v101 = vld [vmem:[#allocation8 + $0x28] sm:$0xff]
      %v102 = vld [vmem:[#allocation8 + $0x30] sm:$0xff]
      %v103 = vld [vmem:[#allocation8 + $0x38] sm:$0xff]
      %v104 = vld [vmem:[#allocation8 + $0x40] sm:$0xff]
      %v105 = vld [vmem:[#allocation8 + $0x48] sm:$0xff]
      %v106 = vld [vmem:[#allocation8 + $0x50] sm:$0xff]
      %v107 = vld [vmem:[#allocation8 + $0x58] sm:$0xff]
      %v108 = vld [vmem:[#allocation8 + $0x60] sm:$0xff]
      %v109 = vld [vmem:[#allocation8 + $0x68] sm:$0xff]
      %v110 = vld [vmem:[#allocation8 + $0x70] sm:$0xff]
      %v111 = vld [vmem:[#allocation8 + $0x78] sm:$0xff]
      %112 = vst [vmem:[#allocation2 + $0x8] sm:$0xff] %v96
      %113 = vst [vmem:[#allocation2 + $0x18] sm:$0xff] %v97
      %114 = vst [vmem:[#allocation2 + $0x28] sm:$0xff] %v98
      %115 = vst [vmem:[#allocation2 + $0x38] sm:$0xff] %v99
      %116 = vst [vmem:[#allocation2 + $0x48] sm:$0xff] %v100
      %117 = vst [vmem:[#allocation2 + $0x58] sm:$0xff] %v101
      %118 = vst [vmem:[#allocation2 + $0x68] sm:$0xff] %v102
      %119 = vst [vmem:[#allocation2 + $0x78] sm:$0xff] %v103
      %120 = vst [vmem:[#allocation2 + $0x88] sm:$0xff] %v104
      %121 = vst [vmem:[#allocation2 + $0x98] sm:$0xff] %v105
      %122 = vst [vmem:[#allocation2 + $0xa8] sm:$0xff] %v106
      %123 = vst [vmem:[#allocation2 + $0xb8] sm:$0xff] %v107
      %124 = vst [vmem:[#allocation2 + $0xc8] sm:$0xff] %v108
      %125 = vst [vmem:[#allocation2 + $0xd8] sm:$0xff] %v109
      %126 = vst [vmem:[#allocation2 + $0xe8] sm:$0xff] %v110
      %127 = vst [vmem:[#allocation2 + $0xf8] sm:$0xff] %v111
    $region41: #{tpu_custom_call.1} parent=1 // pred_fallthru
      _
    %v128 = vld [vmem:[#allocation2] sm:$0xff]
    %v129 = vld [vmem:[#allocation2 + $0x10] sm:$0xff]
    %v130 = vld [vmem:[#allocation2 + $0x20] sm:$0xff]
    %v131 = vld [vmem:[#allocation2 + $0x30] sm:$0xff]
    %v132 = vld [vmem:[#allocation2 + $0x40] sm:$0xff]
    %v133 = vld [vmem:[#allocation2 + $0x50] sm:$0xff]
    %v134 = vld [vmem:[#allocation2 + $0x60] sm:$0xff]
    %v135 = vld [vmem:[#allocation2 + $0x70] sm:$0xff]
    %v136 = vld [vmem:[#allocation2 + $0x80] sm:$0xff]
    %v137 = vld [vmem:[#allocation2 + $0x90] sm:$0xff]
    %v138 = vld [vmem:[#allocation2 + $0xa0] sm:$0xff]
    %v139 = vld [vmem:[#allocation2 + $0xb0] sm:$0xff]
    %v140 = vld [vmem:[#allocation2 + $0xc0] sm:$0xff]
    %v141 = vld [vmem:[#allocation2 + $0xd0] sm:$0xff]
    %v142 = vld [vmem:[#allocation2 + $0xe0] sm:$0xff]
    %v143 = vld [vmem:[#allocation2 + $0xf0] sm:$0xff]
    %v144 = vld [vmem:[#allocation3] sm:$0xff]
    %v145 = vld [vmem:[#allocation3 + $0x8] sm:$0xff]
    %v146 = vld [vmem:[#allocation3 + $0x10] sm:$0xff]
    %v147 = vld [vmem:[#allocation3 + $0x18] sm:$0xff]
    %v148 = vld [vmem:[#allocation3 + $0x20] sm:$0xff]
    %v149 = vld [vmem:[#allocation3 + $0x28] sm:$0xff]
    %v150 = vld [vmem:[#allocation3 + $0x30] sm:$0xff]
    %v151 = vld [vmem:[#allocation3 + $0x38] sm:$0xff]
    %v152 = vld [vmem:[#allocation3 + $0x40] sm:$0xff]
    %v153 = vld [vmem:[#allocation3 + $0x48] sm:$0xff]
    %v154 = vld [vmem:[#allocation3 + $0x50] sm:$0xff]
    %v155 = vld [vmem:[#allocation3 + $0x58] sm:$0xff]
    %v156 = vld [vmem:[#allocation3 + $0x60] sm:$0xff]
    %v157 = vld [vmem:[#allocation3 + $0x68] sm:$0xff]
    %v158 = vld [vmem:[#allocation3 + $0x70] sm:$0xff]
    %v159 = vld [vmem:[#allocation3 + $0x78] sm:$0xff]
    %v160 = vld [vmem:[#allocation3 + $0x80] sm:$0xff]
    %v161 = vld [vmem:[#allocation3 + $0x88] sm:$0xff]
    %v162 = vld [vmem:[#allocation3 + $0x90] sm:$0xff]
    %v163 = vld [vmem:[#allocation3 + $0x98] sm:$0xff]
    %v164 = vld [vmem:[#allocation3 + $0xa0] sm:$0xff]
    %v165 = vld [vmem:[#allocation3 + $0xa8] sm:$0xff]
    %v166 = vld [vmem:[#allocation3 + $0xb0] sm:$0xff]
    %v167 = vld [vmem:[#allocation3 + $0xb8] sm:$0xff]
    %v168 = vld [vmem:[#allocation3 + $0xc0] sm:$0xff]
    %v169 = vld [vmem:[#allocation3 + $0xc8] sm:$0xff]
    %v170 = vld [vmem:[#allocation3 + $0xd0] sm:$0xff]
    %v171 = vld [vmem:[#allocation3 + $0xd8] sm:$0xff]
    %v172 = vld [vmem:[#allocation3 + $0xe0] sm:$0xff]
    %v173 = vld [vmem:[#allocation3 + $0xe8] sm:$0xff]
    %v174 = vld [vmem:[#allocation3 + $0xf0] sm:$0xff]
    %v175 = vld [vmem:[#allocation3 + $0xf8] sm:$0xff]
    %v176 = vld [vmem:[#allocation6] sm:$0xff]
    %v177 = vld [vmem:[#allocation6 + $0x8] sm:$0xff]
    %v178 = vld [vmem:[#allocation6 + $0x10] sm:$0xff]
    %v179 = vld [vmem:[#allocation6 + $0x18] sm:$0xff]
    %v180 = vld [vmem:[#allocation6 + $0x20] sm:$0xff]
    %v181 = vld [vmem:[#allocation6 + $0x28] sm:$0xff]
    %v182 = vld [vmem:[#allocation6 + $0x30] sm:$0xff]
    %v183 = vld [vmem:[#allocation6 + $0x38] sm:$0xff]
    %v184 = vld [vmem:[#allocation6 + $0x40] sm:$0xff]
    %v185 = vld [vmem:[#allocation6 + $0x48] sm:$0xff]
    %v186 = vld [vmem:[#allocation6 + $0x50] sm:$0xff]
    %v187 = vld [vmem:[#allocation6 + $0x58] sm:$0xff]
    %v188 = vld [vmem:[#allocation6 + $0x60] sm:$0xff]
    %v189 = vld [vmem:[#allocation6 + $0x68] sm:$0xff]
    %v190 = vld [vmem:[#allocation6 + $0x70] sm:$0xff]
    %v191 = vld [vmem:[#allocation6 + $0x78] sm:$0xff]
    %v192 = vld [vmem:[#allocation6 + $0x80] sm:$0xff]
    %v193 = vld [vmem:[#allocation6 + $0x88] sm:$0xff]
    %v194 = vld [vmem:[#allocation6 + $0x90] sm:$0xff]
    %v195 = vld [vmem:[#allocation6 + $0x98] sm:$0xff]
    %v196 = vld [vmem:[#allocation6 + $0xa0] sm:$0xff]
    %v197 = vld [vmem:[#allocation6 + $0xa8] sm:$0xff]
    %v198 = vld [vmem:[#allocation6 + $0xb0] sm:$0xff]
    %v199 = vld [vmem:[#allocation6 + $0xb8] sm:$0xff]
    %v200 = vld [vmem:[#allocation6 + $0xc0] sm:$0xff]
    %v201 = vld [vmem:[#allocation6 + $0xc8] sm:$0xff]
    %v202 = vld [vmem:[#allocation6 + $0xd0] sm:$0xff]
    %v203 = vld [vmem:[#allocation6 + $0xd8] sm:$0xff]
    %v204 = vld [vmem:[#allocation6 + $0xe0] sm:$0xff]
    %v205 = vld [vmem:[#allocation6 + $0xe8] sm:$0xff]
    %v206 = vld [vmem:[#allocation6 + $0xf0] sm:$0xff]
    %v207 = vld [vmem:[#allocation6 + $0xf8] sm:$0xff]
    %208 = vmatprep.subr.mxu0 0.0
    %209 = vmatpush1.msra.mxu0 %v176
    %210 = vmatprep.subr.mxu0 0.0
    %211 = vmatpush1.msra.mxu0 %v177
    %212 = vmatprep.subr.mxu0 0.0
    %213 = vmatpush1.msra.mxu0 %v178
    %214 = vmatprep.subr.mxu0 0.0
    %215 = vmatpush1.msra.mxu0 %v179
    %216 = vmatprep.subr.mxu0 0.0
    %217 = vmatpush1.msra.mxu0 %v180
    %218 = vmatprep.subr.mxu0 0.0
    %219 = vmatpush1.msra.mxu0 %v181
    %220 = vmatprep.subr.mxu0 0.0
    %221 = vmatpush1.msra.mxu0 %v182
    %222 = vmatprep.subr.mxu0 0.0
    %223 = vmatpush1.msra.mxu0 %v183
    %224 = vmatprep.subr.mxu0 0.0
    %225 = vmatpush1.msra.mxu0 %v184
    %226 = vmatprep.subr.mxu0 0.0
    %227 = vmatpush1.msra.mxu0 %v185
    %228 = vmatprep.subr.mxu0 0.0
    %229 = vmatpush1.msra.mxu0 %v186
    %230 = vmatprep.subr.mxu0 0.0
    %231 = vmatpush1.msra.mxu0 %v187
    %232 = vmatprep.subr.mxu0 0.0
    %233 = vmatpush1.msra.mxu0 %v188
    %234 = vmatprep.subr.mxu0 0.0
    %235 = vmatpush1.msra.mxu0 %v189
    %236 = vmatprep.subr.mxu0 0.0
    %237 = vmatpush1.msra.mxu0 %v190
    %238 = vmatprep.subr.mxu0 0.0
    %239 = vmatpush1.msra.mxu0 %v191
    %240 = vmatprep.subr.mxu0 0.0
    %241 = vmatpush1.msra.mxu0 %v192
    %242 = vmatprep.subr.mxu0 0.0
    %243 = vmatpush1.msra.mxu0 %v193
    %244 = vmatprep.subr.mxu0 0.0
    %245 = vmatpush1.msra.mxu0 %v194
    %246 = vmatprep.subr.mxu0 0.0
    %247 = vmatpush1.msra.mxu0 %v195
    %248 = vmatprep.subr.mxu0 0.0
    %249 = vmatpush1.msra.mxu0 %v196
    %250 = vmatprep.subr.mxu0 0.0
    %251 = vmatpush1.msra.mxu0 %v197
    %252 = vmatprep.subr.mxu0 0.0
    %253 = vmatpush1.msra.mxu0 %v198
    %254 = vmatprep.subr.mxu0 0.0
    %255 = vmatpush1.msra.mxu0 %v199
    %256 = vmatprep.subr.mxu0 0.0
    %257 = vmatpush1.msra.mxu0 %v200
    %258 = vmatprep.subr.mxu0 0.0
    %259 = vmatpush1.msra.mxu0 %v201
    %260 = vmatprep.subr.mxu0 0.0
    %261 = vmatpush1.msra.mxu0 %v202
    %262 = vmatprep.subr.mxu0 0.0
    %263 = vmatpush1.msra.mxu0 %v203
    %264 = vmatprep.subr.mxu0 0.0
    %265 = vmatpush1.msra.mxu0 %v204
    %266 = vmatprep.subr.mxu0 0.0
    %267 = vmatpush1.msra.mxu0 %v205
    %268 = vmatprep.subr.mxu0 0.0
    %269 = vmatpush1.msra.mxu0 %v206
    %270 = vmatprep.subr.mxu0 0.0
    %271 = vmatpush1.msra.mxu0 %v207
    %272 = vmatprep.mubr.f32.mxu0 %v145
    %273 = vmatmul.mubr.f32.gmra.mrb[0].mxu0 %v144
    %v274 = vpop.f32.mrb[0].mxu0
    %v275 = vadd.f32 0.0, %v274
    %v276 = vpop.f32.mrb[0].mxu0
    %277 = vmatprep.mubr.f32.mxu0 %v147
    %278 = vmatmul.mubr.f32.gmra.mrb[0].mxu0 %v146
    %v279 = vpop.f32.mrb[0].mxu0
    %v280 = vadd.f32 0.0, %v279
    %v281 = vpop.f32.mrb[0].mxu0
    %282 = vmatprep.mubr.f32.mxu0 %v149
    %283 = vmatmul.mubr.f32.gmra.mrb[0].mxu0 %v148
    %v284 = vpop.f32.mrb[0].mxu0
    %v285 = vadd.f32 0.0, %v284
    %v286 = vpop.f32.mrb[0].mxu0
    %287 = vmatprep.mubr.f32.mxu0 %v151
    %288 = vmatmul.mubr.f32.gmra.mrb[0].mxu0 %v150
    %v289 = vpop.f32.mrb[0].mxu0
    %v290 = vadd.f32 0.0, %v289
    %v291 = vpop.f32.mrb[0].mxu0
    %292 = vmatprep.mubr.f32.mxu0 %v153
    %293 = vmatmul.mubr.f32.gmra.mrb[0].mxu0 %v152
    %v294 = vpop.f32.mrb[0].mxu0
    %v295 = vadd.f32 0.0, %v294
    %v296 = vpop.f32.mrb[0].mxu0
    %297 = vmatprep.mubr.f32.mxu0 %v155
    %298 = vmatmul.mubr.f32.gmra.mrb[0].mxu0 %v154
    %v299 = vpop.f32.mrb[0].mxu0
    %v300 = vadd.f32 0.0, %v299
    %v301 = vpop.f32.mrb[0].mxu0
    %302 = vmatprep.mubr.f32.mxu0 %v157
    %303 = vmatmul.mubr.f32.gmra.mrb[0].mxu0 %v156
    %v304 = vpop.f32.mrb[0].mxu0
    %v305 = vadd.f32 0.0, %v304
    %v306 = vpop.f32.mrb[0].mxu0
    %307 = vmatprep.mubr.f32.mxu0 %v159
    %308 = vmatmul.mubr.f32.gmra.mrb[0].mxu0 %v158
    %v309 = vpop.f32.mrb[0].mxu0
    %v310 = vadd.f32 0.0, %v309
    %v311 = vpop.f32.mrb[0].mxu0
    %312 = vmatprep.mubr.f32.mxu0 %v161
    %313 = vmatmul.mubr.f32.gmra.mrb[0].mxu0 %v160
    %v314 = vpop.f32.mrb[0].mxu0
    %v315 = vadd.f32 0.0, %v314
    %v316 = vpop.f32.mrb[0].mxu0
    %317 = vmatprep.mubr.f32.mxu0 %v163
    %318 = vmatmul.mubr.f32.gmra.mrb[0].mxu0 %v162
    %v319 = vpop.f32.mrb[0].mxu0
    %v320 = vadd.f32 0.0, %v319
    %v321 = vpop.f32.mrb[0].mxu0
    %322 = vmatprep.mubr.f32.mxu0 %v165
    %323 = vmatmul.mubr.f32.gmra.mrb[0].mxu0 %v164
    %v324 = vpop.f32.mrb[0].mxu0
    %v325 = vadd.f32 0.0, %v324
    %v326 = vpop.f32.mrb[0].mxu0
    %327 = vmatprep.mubr.f32.mxu0 %v167
    %328 = vmatmul.mubr.f32.gmra.mrb[0].mxu0 %v166
    %v329 = vpop.f32.mrb[0].mxu0
    %v330 = vadd.f32 0.0, %v329
    %v331 = vpop.f32.mrb[0].mxu0
    %332 = vmatprep.mubr.f32.mxu0 %v169
    %333 = vmatmul.mubr.f32.gmra.mrb[0].mxu0 %v168
    %v334 = vpop.f32.mrb[0].mxu0
    %v335 = vadd.f32 0.0, %v334
    %v336 = vpop.f32.mrb[0].mxu0
    %337 = vmatprep.mubr.f32.mxu0 %v171
    %338 = vmatmul.mubr.f32.gmra.mrb[0].mxu0 %v170
    %v339 = vpop.f32.mrb[0].mxu0
    %v340 = vadd.f32 0.0, %v339
    %v341 = vpop.f32.mrb[0].mxu0
    %342 = vmatprep.mubr.f32.mxu0 %v173
    %343 = vmatmul.mubr.f32.gmra.mrb[0].mxu0 %v172
    %v344 = vpop.f32.mrb[0].mxu0
    %v345 = vadd.f32 0.0, %v344
    %v346 = vpop.f32.mrb[0].mxu0
    %347 = vmatprep.mubr.f32.mxu0 %v175
    %348 = vmatmul.mubr.f32.gmra.mrb[0].mxu0 %v174
    %v349 = vpop.f32.mrb[0].mxu0
    %v350 = vadd.f32 0.0, %v349
    %v351 = vpop.f32.mrb[0].mxu0
    %352 = vdwg.mxu0
    %v353 = vadd.f32 %v128, %v275
    %v354 = vadd.f32 %v129, %v280
    %v355 = vadd.f32 %v130, %v285
    %v356 = vadd.f32 %v131, %v290
    %v357 = vadd.f32 %v132, %v295
    %v358 = vadd.f32 %v133, %v300
    %v359 = vadd.f32 %v134, %v305
    %v360 = vadd.f32 %v135, %v310
    %v361 = vadd.f32 %v136, %v315
    %v362 = vadd.f32 %v137, %v320
    %v363 = vadd.f32 %v138, %v325
    %v364 = vadd.f32 %v139, %v330
    %v365 = vadd.f32 %v140, %v335
    %v366 = vadd.f32 %v141, %v340
    %v367 = vadd.f32 %v142, %v345
    %v368 = vadd.f32 %v143, %v350
    %369 = vst [vmem:[#allocation2] sm:$0xff] %v353
    %370 = vst [vmem:[#allocation2 + $0x10] sm:$0xff] %v354
    %371 = vst [vmem:[#allocation2 + $0x20] sm:$0xff] %v355
    %372 = vst [vmem:[#allocation2 + $0x30] sm:$0xff] %v356
    %373 = vst [vmem:[#allocation2 + $0x40] sm:$0xff] %v357
    %374 = vst [vmem:[#allocation2 + $0x50] sm:$0xff] %v358
    %375 = vst [vmem:[#allocation2 + $0x60] sm:$0xff] %v359
    %376 = vst [vmem:[#allocation2 + $0x70] sm:$0xff] %v360
    %377 = vst [vmem:[#allocation2 + $0x80] sm:$0xff] %v361
    %378 = vst [vmem:[#allocation2 + $0x90] sm:$0xff] %v362
    %379 = vst [vmem:[#allocation2 + $0xa0] sm:$0xff] %v363
    %380 = vst [vmem:[#allocation2 + $0xb0] sm:$0xff] %v364
    %381 = vst [vmem:[#allocation2 + $0xc0] sm:$0xff] %v365
    %382 = vst [vmem:[#allocation2 + $0xd0] sm:$0xff] %v366
    %383 = vst [vmem:[#allocation2 + $0xe0] sm:$0xff] %v367
    %384 = vst [vmem:[#allocation2 + $0xf0] sm:$0xff] %v368
    // Predicated region
    $region42: #{tpu_custom_call.1} parent=1 // pred_check
      %p385 = pneg %p76
    $region43: #{tpu_custom_call.1} parent=1 // pred_check_branch
      %387 = sbr.rel (%p385) target = $region45
    $region44: #{tpu_custom_call.1} parent=1 // pred_region
      %v388 = vld [vmem:[#allocation2] sm:$0xff]
      %v389 = vld [vmem:[#allocation2 + $0x8] sm:$0xff]
      %v390 = vld [vmem:[#allocation2 + $0x10] sm:$0xff]
      %v391 = vld [vmem:[#allocation2 + $0x18] sm:$0xff]
      %v392 = vld [vmem:[#allocation2 + $0x20] sm:$0xff]
      %v393 = vld [vmem:[#allocation2 + $0x28] sm:$0xff]
      %v394 = vld [vmem:[#allocation2 + $0x30] sm:$0xff]
      %v395 = vld [vmem:[#allocation2 + $0x38] sm:$0xff]
      %v396 = vld [vmem:[#allocation2 + $0x40] sm:$0xff]
      %v397 = vld [vmem:[#allocation2 + $0x48] sm:$0xff]
      %v398 = vld [vmem:[#allocation2 + $0x50] sm:$0xff]
      %v399 = vld [vmem:[#allocation2 + $0x58] sm:$0xff]
      %v400 = vld [vmem:[#allocation2 + $0x60] sm:$0xff]
      %v401 = vld [vmem:[#allocation2 + $0x68] sm:$0xff]
      %v402 = vld [vmem:[#allocation2 + $0x70] sm:$0xff]
      %v403 = vld [vmem:[#allocation2 + $0x78] sm:$0xff]
      %v404 = vld [vmem:[#allocation2 + $0x80] sm:$0xff]
      %v405 = vld [vmem:[#allocation2 + $0x88] sm:$0xff]
      %v406 = vld [vmem:[#allocation2 + $0x90] sm:$0xff]
      %v407 = vld [vmem:[#allocation2 + $0x98] sm:$0xff]
      %v408 = vld [vmem:[#allocation2 + $0xa0] sm:$0xff]
      %v409 = vld [vmem:[#allocation2 + $0xa8] sm:$0xff]
      %v410 = vld [vmem:[#allocation2 + $0xb0] sm:$0xff]
      %v411 = vld [vmem:[#allocation2 + $0xb8] sm:$0xff]
      %v412 = vld [vmem:[#allocation2 + $0xc0] sm:$0xff]
      %v413 = vld [vmem:[#allocation2 + $0xc8] sm:$0xff]
      %v414 = vld [vmem:[#allocation2 + $0xd0] sm:$0xff]
      %v415 = vld [vmem:[#allocation2 + $0xd8] sm:$0xff]
      %v416 = vld [vmem:[#allocation2 + $0xe0] sm:$0xff]
      %v417 = vld [vmem:[#allocation2 + $0xe8] sm:$0xff]
      %v418 = vld [vmem:[#allocation2 + $0xf0] sm:$0xff]
      %v419 = vld [vmem:[#allocation2 + $0xf8] sm:$0xff]
      %v420 = vld [vmem:[#allocation9] sm:$0xff]
      %v421 = vld [vmem:[#allocation9 + $0x8] sm:$0xff]
      %v422 = vld [vmem:[#allocation9 + $0x10] sm:$0xff]
      %v423 = vld [vmem:[#allocation9 + $0x18] sm:$0xff]
      %v424 = vld [vmem:[#allocation9 + $0x20] sm:$0xff]
      %v425 = vld [vmem:[#allocation9 + $0x28] sm:$0xff]
      %v426 = vld [vmem:[#allocation9 + $0x30] sm:$0xff]
      %v427 = vld [vmem:[#allocation9 + $0x38] sm:$0xff]
      %v428 = vld [vmem:[#allocation9 + $0x40] sm:$0xff]
      %v429 = vld [vmem:[#allocation9 + $0x48] sm:$0xff]
      %v430 = vld [vmem:[#allocation9 + $0x50] sm:$0xff]
      %v431 = vld [vmem:[#allocation9 + $0x58] sm:$0xff]
      %v432 = vld [vmem:[#allocation9 + $0x60] sm:$0xff]
      %v433 = vld [vmem:[#allocation9 + $0x68] sm:$0xff]
      %v434 = vld [vmem:[#allocation9 + $0x70] sm:$0xff]
      %v435 = vld [vmem:[#allocation9 + $0x78] sm:$0xff]
      %v436 = vld [vmem:[#allocation9 + $0x80] sm:$0xff]
      %v437 = vld [vmem:[#allocation9 + $0x88] sm:$0xff]
      %v438 = vld [vmem:[#allocation9 + $0x90] sm:$0xff]
      %v439 = vld [vmem:[#allocation9 + $0x98] sm:$0xff]
      %v440 = vld [vmem:[#allocation9 + $0xa0] sm:$0xff]
      %v441 = vld [vmem:[#allocation9 + $0xa8] sm:$0xff]
      %v442 = vld [vmem:[#allocation9 + $0xb0] sm:$0xff]
      %v443 = vld [vmem:[#allocation9 + $0xb8] sm:$0xff]
      %v444 = vld [vmem:[#allocation9 + $0xc0] sm:$0xff]
      %v445 = vld [vmem:[#allocation9 + $0xc8] sm:$0xff]
      %v446 = vld [vmem:[#allocation9 + $0xd0] sm:$0xff]
      %v447 = vld [vmem:[#allocation9 + $0xd8] sm:$0xff]
      %v448 = vld [vmem:[#allocation9 + $0xe0] sm:$0xff]
      %v449 = vld [vmem:[#allocation9 + $0xe8] sm:$0xff]
      %v450 = vld [vmem:[#allocation9 + $0xf0] sm:$0xff]
      %v451 = vld [vmem:[#allocation9 + $0xf8] sm:$0xff]
      %v452 = vld [vmem:[#allocation9 + $0x100] sm:$0xff]
      %v453 = vld [vmem:[#allocation9 + $0x108] sm:$0xff]
      %v454 = vld [vmem:[#allocation9 + $0x110] sm:$0xff]
      %v455 = vld [vmem:[#allocation9 + $0x118] sm:$0xff]
      %v456 = vld [vmem:[#allocation9 + $0x120] sm:$0xff]
      %v457 = vld [vmem:[#allocation9 + $0x128] sm:$0xff]
      %v458 = vld [vmem:[#allocation9 + $0x130] sm:$0xff]
      %v459 = vld [vmem:[#allocation9 + $0x138] sm:$0xff]
      %v460 = vld [vmem:[#allocation9 + $0x140] sm:$0xff]
      %v461 = vld [vmem:[#allocation9 + $0x148] sm:$0xff]
      %v462 = vld [vmem:[#allocation9 + $0x150] sm:$0xff]
      %v463 = vld [vmem:[#allocation9 + $0x158] sm:$0xff]
      %v464 = vld [vmem:[#allocation9 + $0x160] sm:$0xff]
      %v465 = vld [vmem:[#allocation9 + $0x168] sm:$0xff]
      %v466 = vld [vmem:[#allocation9 + $0x170] sm:$0xff]
      %v467 = vld [vmem:[#allocation9 + $0x178] sm:$0xff]
      %v468 = vld [vmem:[#allocation9 + $0x180] sm:$0xff]
      %v469 = vld [vmem:[#allocation9 + $0x188] sm:$0xff]
      %v470 = vld [vmem:[#allocation9 + $0x190] sm:$0xff]
      %v471 = vld [vmem:[#allocation9 + $0x198] sm:$0xff]
      %v472 = vld [vmem:[#allocation9 + $0x1a0] sm:$0xff]
      %v473 = vld [vmem:[#allocation9 + $0x1a8] sm:$0xff]
      %v474 = vld [vmem:[#allocation9 + $0x1b0] sm:$0xff]
      %v475 = vld [vmem:[#allocation9 + $0x1b8] sm:$0xff]
      %v476 = vld [vmem:[#allocation9 + $0x1c0] sm:$0xff]
      %v477 = vld [vmem:[#allocation9 + $0x1c8] sm:$0xff]
      %v478 = vld [vmem:[#allocation9 + $0x1d0] sm:$0xff]
      %v479 = vld [vmem:[#allocation9 + $0x1d8] sm:$0xff]
      %v480 = vld [vmem:[#allocation9 + $0x1e0] sm:$0xff]
      %v481 = vld [vmem:[#allocation9 + $0x1e8] sm:$0xff]
      %v482 = vld [vmem:[#allocation9 + $0x1f0] sm:$0xff]
      %v483 = vld [vmem:[#allocation9 + $0x1f8] sm:$0xff]
      %v484 = vld [vmem:[%s4] sm:$0x3]
      %v486 = vlaneseq
      %v487 = vshrl.u32 %v486, 7
      %v488 = vsub.s32 0, %v487
      %v489 = vrot.slane %v484, %v488
      %v490 = vlaneseq
      %v491 = vshrl.u32 %v490, 7
      %v492 = vsub.s32 1, %v491
      %v493 = vrot.slane %v484, %v492
      %496 = vmatprep.subr.mxu0 %v421
      %497 = vmatpush1.msra.mxu0 %v420
      %498 = vmatprep.subr.mxu0 %v423
      %499 = vmatpush1.msra.mxu0 %v422
      %500 = vmatprep.subr.mxu0 %v425
      %501 = vmatpush1.msra.mxu0 %v424
      %502 = vmatprep.subr.mxu0 %v427
      %503 = vmatpush1.msra.mxu0 %v426
      %504 = vmatprep.subr.mxu0 %v429
      %505 = vmatpush1.msra.mxu0 %v428
      %506 = vmatprep.subr.mxu0 %v431
      %507 = vmatpush1.msra.mxu0 %v430
      %508 = vmatprep.subr.mxu0 %v433
      %509 = vmatpush1.msra.mxu0 %v432
      %510 = vmatprep.subr.mxu0 %v435
      %511 = vmatpush1.msra.mxu0 %v434
      %512 = vmatprep.subr.mxu0 %v437
      %513 = vmatpush1.msra.mxu0 %v436
      %514 = vmatprep.subr.mxu0 %v439
      %515 = vmatpush1.msra.mxu0 %v438
      %516 = vmatprep.subr.mxu0 %v441
      %517 = vmatpush1.msra.mxu0 %v440
      %518 = vmatprep.subr.mxu0 %v443
      %519 = vmatpush1.msra.mxu0 %v442
      %520 = vmatprep.subr.mxu0 %v445
      %521 = vmatpush1.msra.mxu0 %v444
      %522 = vmatprep.subr.mxu0 %v447
      %523 = vmatpush1.msra.mxu0 %v446
      %524 = vmatprep.subr.mxu0 %v449
      %525 = vmatpush1.msra.mxu0 %v448
      %526 = vmatprep.subr.mxu0 %v451
      %527 = vmatpush1.msra.mxu0 %v450
      %528 = vmatprep.subr.mxu0 %v453
      %529 = vmatpush1.msra.mxu0 %v452
      %530 = vmatprep.subr.mxu0 %v455
      %531 = vmatpush1.msra.mxu0 %v454
      %532 = vmatprep.subr.mxu0 %v457
      %533 = vmatpush1.msra.mxu0 %v456
      %534 = vmatprep.subr.mxu0 %v459
      %535 = vmatpush1.msra.mxu0 %v458
      %536 = vmatprep.subr.mxu0 %v461
      %537 = vmatpush1.msra.mxu0 %v460
      %538 = vmatprep.subr.mxu0 %v463
      %539 = vmatpush1.msra.mxu0 %v462
      %540 = vmatprep.subr.mxu0 %v465
      %541 = vmatpush1.msra.mxu0 %v464
      %542 = vmatprep.subr.mxu0 %v467
      %543 = vmatpush1.msra.mxu0 %v466
      %544 = vmatprep.subr.mxu0 %v469
      %545 = vmatpush1.msra.mxu0 %v468
      %546 = vmatprep.subr.mxu0 %v471
      %547 = vmatpush1.msra.mxu0 %v470
      %548 = vmatprep.subr.mxu0 %v473
      %549 = vmatpush1.msra.mxu0 %v472
      %550 = vmatprep.subr.mxu0 %v475
      %551 = vmatpush1.msra.mxu0 %v474
      %552 = vmatprep.subr.mxu0 %v477
      %553 = vmatpush1.msra.mxu0 %v476
      %554 = vmatprep.subr.mxu0 %v479
      %555 = vmatpush1.msra.mxu0 %v478
      %556 = vmatprep.subr.mxu0 %v481
      %557 = vmatpush1.msra.mxu0 %v480
      %558 = vmatprep.subr.mxu0 %v483
      %559 = vmatpush1.msra.mxu0 %v482
      %560 = vmatprep.mubr.f32.mxu0 %v389
      %561 = vmatmul.mubr.f32.gmra.mrb[0].mxu0 %v388
      %v562 = vpop.f32.mrb[0].mxu0
      %v563 = vadd.f32 %v489, %v562
      %v564 = vpop.f32.mrb[0].mxu0
      %v565 = vadd.f32 %v493, %v564
      %566 = vmatprep.mubr.f32.mxu0 %v391
      %567 = vmatmul.mubr.f32.gmra.mrb[0].mxu0 %v390
      %v568 = vpop.f32.mrb[0].mxu0
      %v569 = vadd.f32 %v489, %v568
      %v570 = vpop.f32.mrb[0].mxu0
      %v571 = vadd.f32 %v493, %v570
      %572 = vmatprep.mubr.f32.mxu0 %v393
      %573 = vmatmul.mubr.f32.gmra.mrb[0].mxu0 %v392
      %v574 = vpop.f32.mrb[0].mxu0
      %v575 = vadd.f32 %v489, %v574
      %v576 = vpop.f32.mrb[0].mxu0
      %v577 = vadd.f32 %v493, %v576
      %578 = vmatprep.mubr.f32.mxu0 %v395
      %579 = vmatmul.mubr.f32.gmra.mrb[0].mxu0 %v394
      %v580 = vpop.f32.mrb[0].mxu0
      %v581 = vadd.f32 %v489, %v580
      %v582 = vpop.f32.mrb[0].mxu0
      %v583 = vadd.f32 %v493, %v582
      %584 = vmatprep.mubr.f32.mxu0 %v397
      %585 = vmatmul.mubr.f32.gmra.mrb[0].mxu0 %v396
      %v586 = vpop.f32.mrb[0].mxu0
      %v587 = vadd.f32 %v489, %v586
      %v588 = vpop.f32.mrb[0].mxu0
      %v589 = vadd.f32 %v493, %v588
      %590 = vmatprep.mubr.f32.mxu0 %v399
      %591 = vmatmul.mubr.f32.gmra.mrb[0].mxu0 %v398
      %v592 = vpop.f32.mrb[0].mxu0
      %v593 = vadd.f32 %v489, %v592
      %v594 = vpop.f32.mrb[0].mxu0
      %v595 = vadd.f32 %v493, %v594
      %596 = vmatprep.mubr.f32.mxu0 %v401
      %597 = vmatmul.mubr.f32.gmra.mrb[0].mxu0 %v400
      %v598 = vpop.f32.mrb[0].mxu0
      %v599 = vadd.f32 %v489, %v598
      %v600 = vpop.f32.mrb[0].mxu0
      %v601 = vadd.f32 %v493, %v600
      %602 = vmatprep.mubr.f32.mxu0 %v403
      %603 = vmatmul.mubr.f32.gmra.mrb[0].mxu0 %v402
      %v604 = vpop.f32.mrb[0].mxu0
      %v605 = vadd.f32 %v489, %v604
      %v606 = vpop.f32.mrb[0].mxu0
      %v607 = vadd.f32 %v493, %v606
      %608 = vmatprep.mubr.f32.mxu0 %v405
      %609 = vmatmul.mubr.f32.gmra.mrb[0].mxu0 %v404
      %v610 = vpop.f32.mrb[0].mxu0
      %v611 = vadd.f32 %v489, %v610
      %v612 = vpop.f32.mrb[0].mxu0
      %v613 = vadd.f32 %v493, %v612
      %614 = vmatprep.mubr.f32.mxu0 %v407
      %615 = vmatmul.mubr.f32.gmra.mrb[0].mxu0 %v406
      %v616 = vpop.f32.mrb[0].mxu0
      %v617 = vadd.f32 %v489, %v616
      %v618 = vpop.f32.mrb[0].mxu0
      %v619 = vadd.f32 %v493, %v618
      %620 = vmatprep.mubr.f32.mxu0 %v409
      %621 = vmatmul.mubr.f32.gmra.mrb[0].mxu0 %v408
      %v622 = vpop.f32.mrb[0].mxu0
      %v623 = vadd.f32 %v489, %v622
      %v624 = vpop.f32.mrb[0].mxu0
      %v625 = vadd.f32 %v493, %v624
      %626 = vmatprep.mubr.f32.mxu0 %v411
      %627 = vmatmul.mubr.f32.gmra.mrb[0].mxu0 %v410
      %v628 = vpop.f32.mrb[0].mxu0
      %v629 = vadd.f32 %v489, %v628
      %v630 = vpop.f32.mrb[0].mxu0
      %v631 = vadd.f32 %v493, %v630
      %632 = vmatprep.mubr.f32.mxu0 %v413
      %633 = vmatmul.mubr.f32.gmra.mrb[0].mxu0 %v412
      %v634 = vpop.f32.mrb[0].mxu0
      %v635 = vadd.f32 %v489, %v634
      %v636 = vpop.f32.mrb[0].mxu0
      %v637 = vadd.f32 %v493, %v636
      %638 = vmatprep.mubr.f32.mxu0 %v415
      %639 = vmatmul.mubr.f32.gmra.mrb[0].mxu0 %v414
      %v640 = vpop.f32.mrb[0].mxu0
      %v641 = vadd.f32 %v489, %v640
      %v642 = vpop.f32.mrb[0].mxu0
      %v643 = vadd.f32 %v493, %v642
      %644 = vmatprep.mubr.f32.mxu0 %v417
      %645 = vmatmul.mubr.f32.gmra.mrb[0].mxu0 %v416
      %v646 = vpop.f32.mrb[0].mxu0
      %v647 = vadd.f32 %v489, %v646
      %v648 = vpop.f32.mrb[0].mxu0
      %v649 = vadd.f32 %v493, %v648
      %650 = vmatprep.mubr.f32.mxu0 %v419
      %651 = vmatmul.mubr.f32.gmra.mrb[0].mxu0 %v418
      %v652 = vpop.f32.mrb[0].mxu0
      %v653 = vadd.f32 %v489, %v652
      %v654 = vpop.f32.mrb[0].mxu0
      %v655 = vadd.f32 %v493, %v654
      %656 = vdwg.mxu0
      %657 = vst [vmem:[#allocation11] sm:$0xff] %v563
      %658 = vst [vmem:[#allocation11 + $0x8] sm:$0xff] %v565
      %659 = vst [vmem:[#allocation11 + $0x10] sm:$0xff] %v569
      %660 = vst [vmem:[#allocation11 + $0x18] sm:$0xff] %v571
      %661 = vst [vmem:[#allocation11 + $0x20] sm:$0xff] %v575
      %662 = vst [vmem:[#allocation11 + $0x28] sm:$0xff] %v577
      %663 = vst [vmem:[#allocation11 + $0x30] sm:$0xff] %v581
      %664 = vst [vmem:[#allocation11 + $0x38] sm:$0xff] %v583
      %665 = vst [vmem:[#allocation11 + $0x40] sm:$0xff] %v587
      %666 = vst [vmem:[#allocation11 + $0x48] sm:$0xff] %v589
      %667 = vst [vmem:[#allocation11 + $0x50] sm:$0xff] %v593
      %668 = vst [vmem:[#allocation11 + $0x58] sm:$0xff] %v595
      %669 = vst [vmem:[#allocation11 + $0x60] sm:$0xff] %v599
      %670 = vst [vmem:[#allocation11 + $0x68] sm:$0xff] %v601
      %671 = vst [vmem:[#allocation11 + $0x70] sm:$0xff] %v605
      %672 = vst [vmem:[#allocation11 + $0x78] sm:$0xff] %v607
      %673 = vst [vmem:[#allocation11 + $0x80] sm:$0xff] %v611
      %674 = vst [vmem:[#allocation11 + $0x88] sm:$0xff] %v613
      %675 = vst [vmem:[#allocation11 + $0x90] sm:$0xff] %v617
      %676 = vst [vmem:[#allocation11 + $0x98] sm:$0xff] %v619
      %677 = vst [vmem:[#allocation11 + $0xa0] sm:$0xff] %v623
      %678 = vst [vmem:[#allocation11 + $0xa8] sm:$0xff] %v625
      %679 = vst [vmem:[#allocation11 + $0xb0] sm:$0xff] %v629
      %680 = vst [vmem:[#allocation11 + $0xb8] sm:$0xff] %v631
      %681 = vst [vmem:[#allocation11 + $0xc0] sm:$0xff] %v635
      %682 = vst [vmem:[#allocation11 + $0xc8] sm:$0xff] %v637
      %683 = vst [vmem:[#allocation11 + $0xd0] sm:$0xff] %v641
      %684 = vst [vmem:[#allocation11 + $0xd8] sm:$0xff] %v643
      %685 = vst [vmem:[#allocation11 + $0xe0] sm:$0xff] %v647
      %686 = vst [vmem:[#allocation11 + $0xe8] sm:$0xff] %v649
      %687 = vst [vmem:[#allocation11 + $0xf0] sm:$0xff] %v653
      %688 = vst [vmem:[#allocation11 + $0xf8] sm:$0xff] %v655
    $region45: #{tpu_custom_call.1} parent=1 // pred_fallthru
      _
    // Predicated region
    $region46: #{tpu_custom_call.1} parent=1 // pred_check
      _
    $region47: #{tpu_custom_call.1} parent=1 // pred_check_branch
      %690 = sbr.rel (0) target = $region49
    $region48: #{tpu_custom_call.1} parent=1 // pred_region
      %s692 = ssub.s32 4096, 4096
      %693 = vsyncadd [#allocation5], %s692
      %s694 = sshll.u32 [#allocation11], 4
      %s695 = int_to_ptr.vmem [resolvable:$true] %s694
      %700 = dma.vmem_to_hbm [thread:$0]  %s695, 4096, %s5, [#allocation5], 256, 256, 16
    $region49: #{tpu_custom_call.1} parent=1 // pred_fallthru
      _
    // Predicated region
    $region50: #{tpu_custom_call.1} parent=1 // pred_check
      _
    $region51: #{tpu_custom_call.1} parent=1 // pred_check_branch
      %702 = sbr.rel (0) target = $region53
    $region52: #{tpu_custom_call.1} parent=1 // pred_region
      %703 = dma.done [#allocation5], 4096
    $region53: #{tpu_custom_call.1} parent=1 // pred_fallthru
      _
    %704 = vsyncpa [#allocation4], 1
    %705 = vsyncpa [#allocation7], 1
    %706 = vsyncpa [#allocation10], 1
    %707 = vsyncpa [#allocation5], 1

</llo_original>
